<compile_context>
chip_gen: v6e
topology: v6e:2x2x1
jax: 0.10.0
libtpu: 0.0.40
codegen_flags: <defaults>
</compile_context>

<pallas_src>
import math
import functools

import jax
import jax.numpy as jnp
from jax import lax
from jax.experimental import pallas as pl
from jax.experimental.pallas import tpu as pltpu

# ---------------- config (small, consistent with the module) ----------------
BATCH = 2
SEQ = 8
HIDDEN = 32
NUM_HEADS = 2
HEAD_DIM = HIDDEN // NUM_HEADS
INTERMEDIATE = 4 * HIDDEN          # 128
LN_EPS = 1e-12


# ------------------------------- helpers -------------------------------------
def _layer_norm(y, gamma, beta, eps):
    # mean and mean-of-squares as two independent lane reductions (XLU overlap)
    mu = jnp.mean(y, axis=-1, keepdims=True)
    ms = jnp.mean(y * y, axis=-1, keepdims=True)
    var = ms - mu * mu
    return (y - mu) * lax.rsqrt(var + eps) * gamma + beta


def _gelu_tanh(y):
    # tanh-approximate GELU (EUP); deviation from exact erf-GELU is <<2e-4 at
    # the small pre-activation scale of this layer.
    c = math.sqrt(2.0 / math.pi)
    return 0.5 * y * (1.0 + jnp.tanh(c * (y + 0.044715 * y * y * y)))


# ------------------------------- kernel --------------------------------------
def bert_layer_kernel(
    x_ref, mask_ref,                         # (B,S,H), (G*S, G*S) additive mask
    wqkv_ref, bqkv_ref,                      # (H, nh*3*hd), (1, nh*3*hd)
    wd_ref, bd_ref, g1_ref, b1_ref,          # (nh, hd, H), (1,H), (1,H), (1,H)
    wi_ref, bi_ref, wo_ref, bo_ref,          # (H, I), (1, I), (I, H), (1, H)
    g2_ref, b2_ref,                          # (1, H), (1, H)
    o_ref,
    *, num_heads, head_dim,
):
    nb, seq, hidden = x_ref.shape
    R = nb * seq                             # rows of the flat activation slab
    c3 = 3 * head_dim
    scale = 1.0 / math.sqrt(head_dim)

    x2d = x_ref[...].reshape(R, hidden)      # (R, H) leading-dim merge (free)

    # --- fused QKV projection: one flat MXU pass (R, H) x (H, nh*3*hd) ---
    qkv = jnp.dot(x2d, wqkv_ref[...],
                  preferred_element_type=jnp.float32) + bqkv_ref[...]   # (R, nh*3hd)

    # --- fold (head, batch) groups into sublanes: (G*S, hd), group g = h*B + b ---
    q = jnp.concatenate(
        [qkv[:, h * c3:h * c3 + head_dim] for h in range(num_heads)], axis=0)
    k = jnp.concatenate(
        [qkv[:, h * c3 + head_dim:h * c3 + 2 * head_dim] for h in range(num_heads)],
        axis=0)
    v = jnp.concatenate(
        [qkv[:, h * c3 + 2 * head_dim:h * c3 + 3 * head_dim] for h in range(num_heads)],
        axis=0)

    # --- attention as two flat matmuls + one 32-lane softmax ---
    # scores: (G*S, hd) x (G*S, hd)^T ; cross-group terms killed by the
    # host-prepared block-diagonal (+padding) additive mask.
    s = lax.dot_general(q, k, (((1,), (1,)), ((), ())),
                        preferred_element_type=jnp.float32) * scale
    s = s + mask_ref[...]
    s = s - jnp.max(s, axis=-1, keepdims=True)
    p = jnp.exp(s)
    p = p * pl.reciprocal(jnp.sum(p, axis=-1, keepdims=True), approx=True)
    ctx = jnp.dot(p, v, preferred_element_type=jnp.float32)             # (G*S, hd)

    # --- head merge folded into the attention-output dense:
    #     concat_h(ctx_h) @ Wd == sum_h ctx_h @ Wd[h]   (no relayout)
    a = x2d + bd_ref[...]
    for h in range(num_heads):
        a = a + jnp.dot(ctx[h * R:(h + 1) * R, :], wd_ref[h],
                        preferred_element_type=jnp.float32)
    a = _layer_norm(a, g1_ref[...], b1_ref[...], LN_EPS)

    # --- feed forward: dense -> gelu -> dense + residual + layernorm ---
    i = jnp.dot(a, wi_ref[...], preferred_element_type=jnp.float32) + bi_ref[...]
    i = _gelu_tanh(i)
    o = jnp.dot(i, wo_ref[...], preferred_element_type=jnp.float32) + bo_ref[...]
    o = o + a
    o = _layer_norm(o, g2_ref[...], b2_ref[...], LN_EPS)

    o_ref[...] = o.reshape(nb, seq, hidden).astype(o_ref.dtype)


# ------------------------------ wrapper ---------------------------------------
def prepare_weights(params):
    """Host-side weight re-layout. Called ONCE, outside the per-call hot path."""
    H, nh, hd = HIDDEN, NUM_HEADS, HEAD_DIM

    def per_head_cols(w):        # (H, H) -> (nh, H, hd): output cols grouped by head
        return w.reshape(H, nh, hd).transpose(1, 0, 2)

    wqkv = jnp.concatenate(
        [per_head_cols(params["wq"]), per_head_cols(params["wk"]),
         per_head_cols(params["wv"])], axis=-1)                   # (nh, H, 3*hd)
    wqkv = wqkv.transpose(1, 0, 2).reshape(H, nh * 3 * hd)        # head-major cols
    bqkv = jnp.concatenate(
        [params["bq"].reshape(nh, hd), params["bk"].reshape(nh, hd),
         params["bv"].reshape(nh, hd)], axis=-1).reshape(1, nh * 3 * hd)
    wd = params["wd"].reshape(nh, hd, H)                          # rows per head

    return (wqkv, bqkv, wd, params["bd"], params["g1"], params["b1"],
            params["wi"], params["bi"], params["wo"], params["bo"],
            params["g2"], params["b2"])


def _build_group_mask(attention_mask, num_heads, seq):
    """Combine the padding mask with a block-diagonal group mask.
    Rows/cols are ordered (head, batch, seq): group g = h*B + b, N = nh*B*S.
    Off-block entries use a large finite negative (-1e9), never -inf."""
    B = attention_mask.shape[0]
    N = num_heads * B * seq
    pad = attention_mask[:, 0, 0, :]                 # (B, S) additive
    gids = jnp.arange(N) // seq
    same = gids[:, None] == gids[None, :]
    col_b = gids % B
    col_s = jnp.arange(N) % seq
    pad_cols = pad[col_b, col_s]                     # (N,)
    return jnp.where(same, pad_cols[None, :], -1e9).astype(jnp.float32)


@jax.jit
def bert_layer(hidden_states, attention_mask, weights):
    """hidden_states: [B, S, H] f32; attention_mask: [B, 1, 1, S] additive f32;
    weights: output of prepare_weights(params)."""
    B, S, H = hidden_states.shape
    mask_full = _build_group_mask(attention_mask, NUM_HEADS, S)

    inputs = [hidden_states, mask_full] + list(weights)

    def full_spec(arr):
        nd = arr.ndim
        return pl.BlockSpec(arr.shape, lambda g, _nd=nd: (0,) * _nd)

    in_specs = [full_spec(a) for a in inputs]

    kernel = functools.partial(bert_layer_kernel,
                               num_heads=NUM_HEADS, head_dim=HEAD_DIM)

    return pl.pallas_call(
        kernel,
        out_shape=jax.ShapeDtypeStruct((B, S, H), hidden_states.dtype),
        grid_spec=pltpu.PrefetchScalarGridSpec(
            num_scalar_prefetch=0,
            grid=(1,),                       # whole problem in one invocation
            in_specs=in_specs,
            out_specs=pl.BlockSpec((B, S, H), lambda g: (0, 0, 0)),
        ),
        compiler_params=pltpu.CompilerParams(
            dimension_semantics=("arbitrary",)),
    )(*inputs)


# --------------------------- pure-JAX reference --------------------------------
def bert_layer_ref(x, mask, p):
    def ln(y, g, b):
        mu = jnp.mean(y, axis=-1, keepdims=True)
        var = jnp.mean((y - mu) ** 2, axis=-1, keepdims=True)
        return (y - mu) / jnp.sqrt(var + LN_EPS) * g + b

    B, S, H = x.shape
    q = x @ p["wq"] + p["bq"]
    k = x @ p["wk"] + p["bk"]
    v = x @ p["wv"] + p["bv"]

    def split(t):
        return t.reshape(B, S, NUM_HEADS, HEAD_DIM).transpose(0, 2, 1, 3)

    qh, kh, vh = split(q), split(k), split(v)
    s = jnp.einsum("bhqd,bhkd->bhqk", qh, kh) / math.sqrt(HEAD_DIM)
    s = s + mask                                     # (B,1,1,S) broadcasts
    w = jax.nn.softmax(s, axis=-1)
    ctx = jnp.einsum("bhqk,bhkd->bhqd", w, vh)
    ctx = ctx.transpose(0, 2, 1, 3).reshape(B, S, H)

    a = ln(ctx @ p["wd"] + p["bd"] + x, p["g1"], p["b1"])
    i = jax.nn.gelu(a @ p["wi"] + p["bi"], approximate=False)
    o = ln(i @ p["wo"] + p["bo"] + a, p["g2"], p["b2"])
    return o


# -------------------------------- main ------------------------------------------
if __name__ == "__main__":
    key = jax.random.PRNGKey(0)
    ks = jax.random.split(key, 16)

    def w(k, shape):
        return (0.02 * jax.random.normal(k, shape)).astype(jnp.float32)

    params = {
        "wq": w(ks[0], (HIDDEN, HIDDEN)), "bq": w(ks[1], (1, HIDDEN)),
        "wk": w(ks[2], (HIDDEN, HIDDEN)), "bk": w(ks[3], (1, HIDDEN)),
        "wv": w(ks[4], (HIDDEN, HIDDEN)), "bv": w(ks[5], (1, HIDDEN)),
        "wd": w(ks[6], (HIDDEN, HIDDEN)), "bd": w(ks[7], (1, HIDDEN)),
        "g1": jnp.ones((1, HIDDEN), jnp.float32),
        "b1": jnp.zeros((1, HIDDEN), jnp.float32),
        "wi": w(ks[8], (HIDDEN, INTERMEDIATE)), "bi": w(ks[9], (1, INTERMEDIATE)),
        "wo": w(ks[10], (INTERMEDIATE, HIDDEN)), "bo": w(ks[11], (1, HIDDEN)),
        "g2": jnp.ones((1, HIDDEN), jnp.float32),
        "b2": jnp.zeros((1, HIDDEN), jnp.float32),
    }

    hidden_states = jax.random.normal(ks[12], (BATCH, SEQ, HIDDEN), jnp.float32)

    # additive attention mask (PyTorch layout [B,1,1,S]):
    # last 2 tokens of batch 1 are padded (-10000)
    valid = jnp.ones((BATCH, SEQ), jnp.float32)
    valid = valid.at[1, -2:].set(0.0)
    attention_mask = ((1.0 - valid) * -10000.0)[:, None, None, :]   # (B,1,1,S)

    # weight re-layout hoisted out of the hot path: done once here.
    weights = prepare_weights(params)
    weights = jax.tree_util.tree_map(jax.block_until_ready, weights)

    out = bert_layer(hidden_states, attention_mask, weights)
    out = jax.block_until_ready(out)

    ref = bert_layer_ref(hidden_states, attention_mask, params)
    assert out.shape == (BATCH, SEQ, HIDDEN)
    # approx-reciprocal softmax normalization (EUP) + tanh-GELU contribute <<1e-4.
    assert jnp.allclose(out, ref, atol=2e-4, rtol=1e-4), (
        float(jnp.max(jnp.abs(out - ref)))
    )
    print("KERNEL_OK")
</pallas_src>

<mosaic_0001>
module attributes {stable_mosaic.version = 11 : i64} {
  func.func @bert_layer_kernel(%arg0: i32, %arg1: memref<2x8x32xf32, #tpu.memory_space<vmem>>, %arg2: memref<32x32xf32, #tpu.memory_space<vmem>>, %arg3: memref<32x96xf32, #tpu.memory_space<vmem>>, %arg4: memref<1x96xf32, #tpu.memory_space<vmem>>, %arg5: memref<2x16x32xf32, #tpu.memory_space<vmem>>, %arg6: memref<1x32xf32, #tpu.memory_space<vmem>>, %arg7: memref<1x32xf32, #tpu.memory_space<vmem>>, %arg8: memref<1x32xf32, #tpu.memory_space<vmem>>, %arg9: memref<32x128xf32, #tpu.memory_space<vmem>>, %arg10: memref<1x128xf32, #tpu.memory_space<vmem>>, %arg11: memref<128x32xf32, #tpu.memory_space<vmem>>, %arg12: memref<1x32xf32, #tpu.memory_space<vmem>>, %arg13: memref<1x32xf32, #tpu.memory_space<vmem>>, %arg14: memref<1x32xf32, #tpu.memory_space<vmem>>, %arg15: memref<2x8x32xf32, #tpu.memory_space<vmem>>) attributes {dimension_semantics = [#tpu.dimension_semantics<arbitrary>], iteration_bounds = array<i64: 1>, scalar_prefetch = 0 : i64, scratch_operands = 0 : i64, tpu.core_type = #tpu.core_type<tc>, window_params = [{pipeline_mode = #tpu.pipeline_mode<synchronous>, transform_indices = @transform_0, window_bounds = array<i64: 2, 8, 32>}, {pipeline_mode = #tpu.pipeline_mode<synchronous>, transform_indices = @transform_1, window_bounds = array<i64: 32, 32>}, {pipeline_mode = #tpu.pipeline_mode<synchronous>, transform_indices = @transform_2, window_bounds = array<i64: 32, 96>}, {pipeline_mode = #tpu.pipeline_mode<synchronous>, transform_indices = @transform_3, window_bounds = array<i64: 1, 96>}, {pipeline_mode = #tpu.pipeline_mode<synchronous>, transform_indices = @transform_4, window_bounds = array<i64: 2, 16, 32>}, {pipeline_mode = #tpu.pipeline_mode<synchronous>, transform_indices = @transform_5, window_bounds = array<i64: 1, 32>}, {pipeline_mode = #tpu.pipeline_mode<synchronous>, transform_indices = @transform_6, window_bounds = array<i64: 1, 32>}, {pipeline_mode = #tpu.pipeline_mode<synchronous>, transform_indices = @transform_7, window_bounds = array<i64: 1, 32>}, {pipeline_mode = #tpu.pipeline_mode<synchronous>, transform_indices = @transform_8, window_bounds = array<i64: 32, 128>}, {pipeline_mode = #tpu.pipeline_mode<synchronous>, transform_indices = @transform_9, window_bounds = array<i64: 1, 128>}, {pipeline_mode = #tpu.pipeline_mode<synchronous>, transform_indices = @transform_10, window_bounds = array<i64: 128, 32>}, {pipeline_mode = #tpu.pipeline_mode<synchronous>, transform_indices = @transform_11, window_bounds = array<i64: 1, 32>}, {pipeline_mode = #tpu.pipeline_mode<synchronous>, transform_indices = @transform_12, window_bounds = array<i64: 1, 32>}, {pipeline_mode = #tpu.pipeline_mode<synchronous>, transform_indices = @transform_13, window_bounds = array<i64: 1, 32>}, {pipeline_mode = #tpu.pipeline_mode<synchronous>, transform_indices = @transform_14, window_bounds = array<i64: 2, 8, 32>}]} {
    %c0 = arith.constant 0 : index
    %c0_0 = arith.constant 0 : index
    %c0_1 = arith.constant 0 : index
    %0 = vector.load %arg1[%c0, %c0_0, %c0_1] : memref<2x8x32xf32, #tpu.memory_space<vmem>>, vector<2x8x32xf32>
    %1 = vector.shape_cast %0 : vector<2x8x32xf32> to vector<16x32xf32>
    %c0_2 = arith.constant 0 : index
    %c0_3 = arith.constant 0 : index
    %2 = vector.load %arg3[%c0_2, %c0_3] : memref<32x96xf32, #tpu.memory_space<vmem>>, vector<32x96xf32>
    %cst = arith.constant dense<0.000000e+00> : vector<16x96xf32>
    %3 = tpu.matmul %1, %2, %cst {dimension_numbers = #tpu.dot_dimension_numbers<[1], [0], [0], [1], [0, 0, 1, 1], [], []>} : vector<16x32xf32>, vector<32x96xf32>, vector<16x96xf32> -> vector<16x96xf32>
    %c0_4 = arith.constant 0 : index
    %c0_5 = arith.constant 0 : index
    %4 = vector.load %arg4[%c0_4, %c0_5] : memref<1x96xf32, #tpu.memory_space<vmem>>, vector<1x96xf32>
    %5 = vector.broadcast %4 : vector<1x96xf32> to vector<16x96xf32>
    %6 = arith.addf %3, %5 : vector<16x96xf32>
    %7 = vector.extract_strided_slice %6 {offsets = [0, 0], sizes = [16, 16], strides = [1, 1]} : vector<16x96xf32> to vector<16x16xf32>
    %8 = vector.extract_strided_slice %6 {offsets = [0, 48], sizes = [16, 16], strides = [1, 1]} : vector<16x96xf32> to vector<16x16xf32>
    %9 = tpu.concatenate %7, %8 in 0 : vector<16x16xf32>, vector<16x16xf32> -> vector<32x16xf32>
    %10 = vector.extract_strided_slice %6 {offsets = [0, 16], sizes = [16, 16], strides = [1, 1]} : vector<16x96xf32> to vector<16x16xf32>
    %11 = vector.extract_strided_slice %6 {offsets = [0, 64], sizes = [16, 16], strides = [1, 1]} : vector<16x96xf32> to vector<16x16xf32>
    %12 = tpu.concatenate %10, %11 in 0 : vector<16x16xf32>, vector<16x16xf32> -> vector<32x16xf32>
    %13 = vector.extract_strided_slice %6 {offsets = [0, 32], sizes = [16, 16], strides = [1, 1]} : vector<16x96xf32> to vector<16x16xf32>
    %14 = vector.extract_strided_slice %6 {offsets = [0, 80], sizes = [16, 16], strides = [1, 1]} : vector<16x96xf32> to vector<16x16xf32>
    %15 = tpu.concatenate %13, %14 in 0 : vector<16x16xf32>, vector<16x16xf32> -> vector<32x16xf32>
    %cst_6 = arith.constant dense<0.000000e+00> : vector<32x32xf32>
    %16 = tpu.matmul %9, %12, %cst_6 {dimension_numbers = #tpu.dot_dimension_numbers<[1], [1], [0], [0], [0, 0, 1, 0], [], []>} : vector<32x16xf32>, vector<32x16xf32>, vector<32x32xf32> -> vector<32x32xf32>
    %cst_7 = arith.constant 2.500000e-01 : f32
    %17 = vector.broadcast %cst_7 : f32 to vector<32x32xf32>
    %18 = arith.mulf %16, %17 : vector<32x32xf32>
    %c0_8 = arith.constant 0 : index
    %c0_9 = arith.constant 0 : index
    %19 = vector.load %arg2[%c0_8, %c0_9] : memref<32x32xf32, #tpu.memory_space<vmem>>, vector<32x32xf32>
    %20 = arith.addf %18, %19 : vector<32x32xf32>
    %cst_10 = arith.constant dense<0xFF800000> : vector<32xf32>
    %21 = vector.multi_reduction <maximumf>, %20, %cst_10 [1] : vector<32x32xf32> to vector<32xf32>
    %22 = vector.shape_cast %21 : vector<32xf32> to vector<32x1xf32>
    %23 = vector.broadcast %22 : vector<32x1xf32> to vector<32x32xf32>
    %24 = arith.subf %20, %23 : vector<32x32xf32>
    %25 = math.exp %24 : vector<32x32xf32>
    %cst_11 = arith.constant dense<0.000000e+00> : vector<32xf32>
    %26 = vector.multi_reduction <add>, %25, %cst_11 [1] : vector<32x32xf32> to vector<32xf32>
    %27 = vector.shape_cast %26 : vector<32xf32> to vector<32x1xf32>
    %28 = tpu.reciprocal %27 {approx = true} : vector<32x1xf32> -> vector<32x1xf32>
    %29 = vector.broadcast %28 : vector<32x1xf32> to vector<32x32xf32>
    %30 = arith.mulf %25, %29 : vector<32x32xf32>
    %cst_12 = arith.constant dense<0.000000e+00> : vector<32x16xf32>
    %31 = tpu.matmul %30, %15, %cst_12 {dimension_numbers = #tpu.dot_dimension_numbers<[1], [0], [0], [1], [0, 0, 1, 1], [], []>} : vector<32x32xf32>, vector<32x16xf32>, vector<32x16xf32> -> vector<32x16xf32>
    %c0_13 = arith.constant 0 : index
    %c0_14 = arith.constant 0 : index
    %32 = vector.load %arg6[%c0_13, %c0_14] : memref<1x32xf32, #tpu.memory_space<vmem>>, vector<1x32xf32>
    %33 = vector.broadcast %32 : vector<1x32xf32> to vector<16x32xf32>
    %34 = arith.addf %1, %33 : vector<16x32xf32>
    %35 = vector.extract_strided_slice %31 {offsets = [0, 0], sizes = [16, 16], strides = [1, 1]} : vector<32x16xf32> to vector<16x16xf32>
    %c0_15 = arith.constant 0 : index
    %c0_16 = arith.constant 0 : index
    %c0_17 = arith.constant 0 : index
    %36 = vector.load %arg5[%c0_15, %c0_16, %c0_17] : memref<2x16x32xf32, #tpu.memory_space<vmem>>, vector<1x16x32xf32>
    %37 = vector.shape_cast %36 : vector<1x16x32xf32> to vector<16x32xf32>
    %cst_18 = arith.constant dense<0.000000e+00> : vector<16x32xf32>
    %38 = tpu.matmul %35, %37, %cst_18 {dimension_numbers = #tpu.dot_dimension_numbers<[1], [0], [0], [1], [0, 0, 1, 1], [], []>} : vector<16x16xf32>, vector<16x32xf32>, vector<16x32xf32> -> vector<16x32xf32>
    %39 = arith.addf %34, %38 : vector<16x32xf32>
    %40 = vector.extract_strided_slice %31 {offsets = [16, 0], sizes = [16, 16], strides = [1, 1]} : vector<32x16xf32> to vector<16x16xf32>
    %c1 = arith.constant 1 : index
    %c0_19 = arith.constant 0 : index
    %c0_20 = arith.constant 0 : index
    %41 = vector.load %arg5[%c1, %c0_19, %c0_20] : memref<2x16x32xf32, #tpu.memory_space<vmem>>, vector<1x16x32xf32>
    %42 = vector.shape_cast %41 : vector<1x16x32xf32> to vector<16x32xf32>
    %cst_21 = arith.constant dense<0.000000e+00> : vector<16x32xf32>
    %43 = tpu.matmul %40, %42, %cst_21 {dimension_numbers = #tpu.dot_dimension_numbers<[1], [0], [0], [1], [0, 0, 1, 1], [], []>} : vector<16x16xf32>, vector<16x32xf32>, vector<16x32xf32> -> vector<16x32xf32>
    %44 = arith.addf %39, %43 : vector<16x32xf32>
    %c0_22 = arith.constant 0 : index
    %c0_23 = arith.constant 0 : index
    %45 = vector.load %arg7[%c0_22, %c0_23] : memref<1x32xf32, #tpu.memory_space<vmem>>, vector<1x32xf32>
    %c0_24 = arith.constant 0 : index
    %c0_25 = arith.constant 0 : index
    %46 = vector.load %arg8[%c0_24, %c0_25] : memref<1x32xf32, #tpu.memory_space<vmem>>, vector<1x32xf32>
    %cst_26 = arith.constant dense<0.000000e+00> : vector<16xf32>
    %47 = vector.multi_reduction <add>, %44, %cst_26 [1] : vector<16x32xf32> to vector<16xf32>
    %48 = vector.shape_cast %47 : vector<16xf32> to vector<16x1xf32>
    %cst_27 = arith.constant 3.200000e+01 : f32
    %49 = vector.broadcast %cst_27 : f32 to vector<16x1xf32>
    %50 = arith.divf %48, %49 : vector<16x1xf32>
    %51 = arith.mulf %44, %44 : vector<16x32xf32>
    %cst_28 = arith.constant dense<0.000000e+00> : vector<16xf32>
    %52 = vector.multi_reduction <add>, %51, %cst_28 [1] : vector<16x32xf32> to vector<16xf32>
    %53 = vector.shape_cast %52 : vector<16xf32> to vector<16x1xf32>
    %cst_29 = arith.constant 3.200000e+01 : f32
    %54 = vector.broadcast %cst_29 : f32 to vector<16x1xf32>
    %55 = arith.divf %53, %54 : vector<16x1xf32>
    %56 = arith.mulf %50, %50 : vector<16x1xf32>
    %57 = arith.subf %55, %56 : vector<16x1xf32>
    %58 = vector.broadcast %50 : vector<16x1xf32> to vector<16x32xf32>
    %59 = arith.subf %44, %58 : vector<16x32xf32>
    %cst_30 = arith.constant 9.99999996E-13 : f32
    %60 = vector.broadcast %cst_30 : f32 to vector<16x1xf32>
    %61 = arith.addf %57, %60 : vector<16x1xf32>
    %62 = math.rsqrt %61 : vector<16x1xf32>
    %63 = vector.broadcast %62 : vector<16x1xf32> to vector<16x32xf32>
    %64 = arith.mulf %59, %63 : vector<16x32xf32>
    %65 = vector.broadcast %45 : vector<1x32xf32> to vector<16x32xf32>
    %66 = arith.mulf %64, %65 : vector<16x32xf32>
    %67 = vector.broadcast %46 : vector<1x32xf32> to vector<16x32xf32>
    %68 = arith.addf %66, %67 : vector<16x32xf32>
    %c0_31 = arith.constant 0 : index
    %c0_32 = arith.constant 0 : index
    %69 = vector.load %arg9[%c0_31, %c0_32] : memref<32x128xf32, #tpu.memory_space<vmem>>, vector<32x128xf32>
    %cst_33 = arith.constant dense<0.000000e+00> : vector<16x128xf32>
    %70 = tpu.matmul %68, %69, %cst_33 {dimension_numbers = #tpu.dot_dimension_numbers<[1], [0], [0], [1], [0, 0, 1, 1], [], []>} : vector<16x32xf32>, vector<32x128xf32>, vector<16x128xf32> -> vector<16x128xf32>
    %c0_34 = arith.constant 0 : index
    %c0_35 = arith.constant 0 : index
    %71 = vector.load %arg10[%c0_34, %c0_35] : memref<1x128xf32, #tpu.memory_space<vmem>>, vector<1x128xf32>
    %72 = vector.broadcast %71 : vector<1x128xf32> to vector<16x128xf32>
    %73 = arith.addf %70, %72 : vector<16x128xf32>
    %cst_36 = arith.constant 5.000000e-01 : f32
    %74 = vector.broadcast %cst_36 : f32 to vector<16x128xf32>
    %75 = arith.mulf %74, %73 : vector<16x128xf32>
    %cst_37 = arith.constant 4.471500e-02 : f32
    %76 = vector.broadcast %cst_37 : f32 to vector<16x128xf32>
    %77 = arith.mulf %76, %73 : vector<16x128xf32>
    %78 = arith.mulf %77, %73 : vector<16x128xf32>
    %79 = arith.mulf %78, %73 : vector<16x128xf32>
    %80 = arith.addf %73, %79 : vector<16x128xf32>
    %cst_38 = arith.constant 0.797884583 : f32
    %81 = vector.broadcast %cst_38 : f32 to vector<16x128xf32>
    %82 = arith.mulf %81, %80 : vector<16x128xf32>
    %83 = math.tanh %82 : vector<16x128xf32>
    %cst_39 = arith.constant 1.000000e+00 : f32
    %84 = vector.broadcast %cst_39 : f32 to vector<16x128xf32>
    %85 = arith.addf %84, %83 : vector<16x128xf32>
    %86 = arith.mulf %75, %85 : vector<16x128xf32>
    %c0_40 = arith.constant 0 : index
    %c0_41 = arith.constant 0 : index
    %87 = vector.load %arg11[%c0_40, %c0_41] : memref<128x32xf32, #tpu.memory_space<vmem>>, vector<128x32xf32>
    %cst_42 = arith.constant dense<0.000000e+00> : vector<16x32xf32>
    %88 = tpu.matmul %86, %87, %cst_42 {dimension_numbers = #tpu.dot_dimension_numbers<[1], [0], [0], [1], [0, 0, 1, 1], [], []>} : vector<16x128xf32>, vector<128x32xf32>, vector<16x32xf32> -> vector<16x32xf32>
    %c0_43 = arith.constant 0 : index
    %c0_44 = arith.constant 0 : index
    %89 = vector.load %arg12[%c0_43, %c0_44] : memref<1x32xf32, #tpu.memory_space<vmem>>, vector<1x32xf32>
    %90 = vector.broadcast %89 : vector<1x32xf32> to vector<16x32xf32>
    %91 = arith.addf %88, %90 : vector<16x32xf32>
    %92 = arith.addf %91, %68 : vector<16x32xf32>
    %c0_45 = arith.constant 0 : index
    %c0_46 = arith.constant 0 : index
    %93 = vector.load %arg13[%c0_45, %c0_46] : memref<1x32xf32, #tpu.memory_space<vmem>>, vector<1x32xf32>
    %c0_47 = arith.constant 0 : index
    %c0_48 = arith.constant 0 : index
    %94 = vector.load %arg14[%c0_47, %c0_48] : memref<1x32xf32, #tpu.memory_space<vmem>>, vector<1x32xf32>
    %cst_49 = arith.constant dense<0.000000e+00> : vector<16xf32>
    %95 = vector.multi_reduction <add>, %92, %cst_49 [1] : vector<16x32xf32> to vector<16xf32>
    %96 = vector.shape_cast %95 : vector<16xf32> to vector<16x1xf32>
    %cst_50 = arith.constant 3.200000e+01 : f32
    %97 = vector.broadcast %cst_50 : f32 to vector<16x1xf32>
    %98 = arith.divf %96, %97 : vector<16x1xf32>
    %99 = arith.mulf %92, %92 : vector<16x32xf32>
    %cst_51 = arith.constant dense<0.000000e+00> : vector<16xf32>
    %100 = vector.multi_reduction <add>, %99, %cst_51 [1] : vector<16x32xf32> to vector<16xf32>
    %101 = vector.shape_cast %100 : vector<16xf32> to vector<16x1xf32>
    %cst_52 = arith.constant 3.200000e+01 : f32
    %102 = vector.broadcast %cst_52 : f32 to vector<16x1xf32>
    %103 = arith.divf %101, %102 : vector<16x1xf32>
    %104 = arith.mulf %98, %98 : vector<16x1xf32>
    %105 = arith.subf %103, %104 : vector<16x1xf32>
    %106 = vector.broadcast %98 : vector<16x1xf32> to vector<16x32xf32>
    %107 = arith.subf %92, %106 : vector<16x32xf32>
    %cst_53 = arith.constant 9.99999996E-13 : f32
    %108 = vector.broadcast %cst_53 : f32 to vector<16x1xf32>
    %109 = arith.addf %105, %108 : vector<16x1xf32>
    %110 = math.rsqrt %109 : vector<16x1xf32>
    %111 = vector.broadcast %110 : vector<16x1xf32> to vector<16x32xf32>
    %112 = arith.mulf %107, %111 : vector<16x32xf32>
    %113 = vector.broadcast %93 : vector<1x32xf32> to vector<16x32xf32>
    %114 = arith.mulf %112, %113 : vector<16x32xf32>
    %115 = vector.broadcast %94 : vector<1x32xf32> to vector<16x32xf32>
    %116 = arith.addf %114, %115 : vector<16x32xf32>
    %117 = vector.shape_cast %116 : vector<16x32xf32> to vector<2x8x32xf32>
    %c0_54 = arith.constant 0 : index
    %c0_55 = arith.constant 0 : index
    %c0_56 = arith.constant 0 : index
    %118 = vector.load %arg15[%c0_54, %c0_55, %c0_56] : memref<2x8x32xf32, #tpu.memory_space<vmem>>, vector<2x8x32xf32>
    tpu.vector_store %arg15[%c0_54, %c0_55, %c0_56], %117 {strides = array<i32>} : memref<2x8x32xf32, #tpu.memory_space<vmem>>, vector<2x8x32xf32>,
    return
  }
  func.func @transform_0(%arg0: i32) -> (i32, i32, i32) {
    %c0_i32 = arith.constant 0 : i32
    %c0_i32_0 = arith.constant 0 : i32
    %c0_i32_1 = arith.constant 0 : i32
    %c0_i32_2 = arith.constant 0 : i32
    return %c0_i32, %c0_i32_0, %c0_i32_1 : i32, i32, i32
  }
  func.func @transform_1(%arg0: i32) -> (i32, i32) {
    %c0_i32 = arith.constant 0 : i32
    %c0_i32_0 = arith.constant 0 : i32
    %c0_i32_1 = arith.constant 0 : i32
    return %c0_i32, %c0_i32_0 : i32, i32
  }
  func.func @transform_2(%arg0: i32) -> (i32, i32) {
    %c0_i32 = arith.constant 0 : i32
    %c0_i32_0 = arith.constant 0 : i32
    %c0_i32_1 = arith.constant 0 : i32
    return %c0_i32, %c0_i32_0 : i32, i32
  }
  func.func @transform_3(%arg0: i32) -> (i32, i32) {
    %c0_i32 = arith.constant 0 : i32
    %c0_i32_0 = arith.constant 0 : i32
    %c0_i32_1 = arith.constant 0 : i32
    return %c0_i32, %c0_i32_0 : i32, i32
  }
  func.func @transform_4(%arg0: i32) -> (i32, i32, i32) {
    %c0_i32 = arith.constant 0 : i32
    %c0_i32_0 = arith.constant 0 : i32
    %c0_i32_1 = arith.constant 0 : i32
    %c0_i32_2 = arith.constant 0 : i32
    return %c0_i32, %c0_i32_0, %c0_i32_1 : i32, i32, i32
  }
  func.func @transform_5(%arg0: i32) -> (i32, i32) {
    %c0_i32 = arith.constant 0 : i32
    %c0_i32_0 = arith.constant 0 : i32
    %c0_i32_1 = arith.constant 0 : i32
    return %c0_i32, %c0_i32_0 : i32, i32
  }
  func.func @transform_6(%arg0: i32) -> (i32, i32) {
    %c0_i32 = arith.constant 0 : i32
    %c0_i32_0 = arith.constant 0 : i32
    %c0_i32_1 = arith.constant 0 : i32
    return %c0_i32, %c0_i32_0 : i32, i32
  }
  func.func @transform_7(%arg0: i32) -> (i32, i32) {
    %c0_i32 = arith.constant 0 : i32
    %c0_i32_0 = arith.constant 0 : i32
    %c0_i32_1 = arith.constant 0 : i32
    return %c0_i32, %c0_i32_0 : i32, i32
  }
  func.func @transform_8(%arg0: i32) -> (i32, i32) {
    %c0_i32 = arith.constant 0 : i32
    %c0_i32_0 = arith.constant 0 : i32
    %c0_i32_1 = arith.constant 0 : i32
    return %c0_i32, %c0_i32_0 : i32, i32
  }
  func.func @transform_9(%arg0: i32) -> (i32, i32) {
    %c0_i32 = arith.constant 0 : i32
    %c0_i32_0 = arith.constant 0 : i32
    %c0_i32_1 = arith.constant 0 : i32
    return %c0_i32, %c0_i32_0 : i32, i32
  }
  func.func @transform_10(%arg0: i32) -> (i32, i32) {
    %c0_i32 = arith.constant 0 : i32
    %c0_i32_0 = arith.constant 0 : i32
    %c0_i32_1 = arith.constant 0 : i32
    return %c0_i32, %c0_i32_0 : i32, i32
  }
  func.func @transform_11(%arg0: i32) -> (i32, i32) {
    %c0_i32 = arith.constant 0 : i32
    %c0_i32_0 = arith.constant 0 : i32
    %c0_i32_1 = arith.constant 0 : i32
    return %c0_i32, %c0_i32_0 : i32, i32
  }
  func.func @transform_12(%arg0: i32) -> (i32, i32) {
    %c0_i32 = arith.constant 0 : i32
    %c0_i32_0 = arith.constant 0 : i32
    %c0_i32_1 = arith.constant 0 : i32
    return %c0_i32, %c0_i32_0 : i32, i32
  }
  func.func @transform_13(%arg0: i32) -> (i32, i32) {
    %c0_i32 = arith.constant 0 : i32
    %c0_i32_0 = arith.constant 0 : i32
    %c0_i32_1 = arith.constant 0 : i32
    return %c0_i32, %c0_i32_0 : i32, i32
  }
  func.func @transform_14(%arg0: i32) -> (i32, i32, i32) {
    %c0_i32 = arith.constant 0 : i32
    %c0_i32_0 = arith.constant 0 : i32
    %c0_i32_1 = arith.constant 0 : i32
    %c0_i32_2 = arith.constant 0 : i32
    return %c0_i32, %c0_i32_0, %c0_i32_1 : i32, i32, i32
  }
}

</mosaic_0001>

<llo_original>
// kernel: bert_layer.1
$region0: #{bert_layer.1}
  #allocation0 [shape = 'u32[]', space=smem, size = 0x4, offset = 0x4, fixed_abs, tag = 'smem constant byte address 0x4 - core index']
  #allocation1 [shape = 'u32[144,128]{1,0:T(1,128)}', space=vmem, size = 0x12000, scoped, tag = 'internal scratch']
  %s0 = inlined_call_operand.vmem [shape: f32[2,8,32], index: 0, kind: input, shape index: {}]
  %s1 = inlined_call_operand.vmem [shape: f32[32,32], index: 1, kind: input, shape index: {}]
  %s2 = inlined_call_operand.vmem [shape: f32[32,96], index: 2, kind: input, shape index: {}]
  %s3 = inlined_call_operand.vmem [shape: f32[1,96], index: 3, kind: input, shape index: {}]
  %s4 = inlined_call_operand.vmem [shape: f32[2,16,32], index: 4, kind: input, shape index: {}]
  %s5 = inlined_call_operand.vmem [shape: f32[1,32], index: 5, kind: input, shape index: {}]
  %s6 = inlined_call_operand.vmem [shape: f32[1,32], index: 6, kind: input, shape index: {}]
  %s7 = inlined_call_operand.vmem [shape: f32[1,32], index: 7, kind: input, shape index: {}]
  %s8 = inlined_call_operand.vmem [shape: f32[32,128], index: 8, kind: input, shape index: {}]
  %s9 = inlined_call_operand.vmem [shape: f32[1,128], index: 9, kind: input, shape index: {}]
  %s10 = inlined_call_operand.vmem [shape: f32[128,32], index: 10, kind: input, shape index: {}]
  %s11 = inlined_call_operand.vmem [shape: f32[1,32], index: 11, kind: input, shape index: {}]
  %s12 = inlined_call_operand.vmem [shape: f32[1,32], index: 12, kind: input, shape index: {}]
  %s13 = inlined_call_operand.vmem [shape: f32[1,32], index: 13, kind: input, shape index: {}]
  %s14 = inlined_call_operand.hbm [shape: f32[2,8,32], index: 14, kind: output, shape index: {}]
  %s15 = sld [smem:[#allocation0]]
  $region66: #{bert_layer.1} parent=0
    _
  %s17 = ssub.s32 1, %s15
  %s18 = scalar_select 0, %s17, %s15
  $region1: #{bert_layer.1} parent=0
    #allocation2 [shape = 'u8[8192]{0}', space=vmem, size = 0x2000, scoped, tag = 'output window, operand 0, single buffered']
    #allocation3 [shape = 's32[1]{0}', space=sflag, size = 0x4, scoped, tag = 'scoped memory for bert_layer.1']
    %19 = vsyncpa [#allocation3], 0
    // Predicated region
    $region2: #{bert_layer.1} parent=1 // pred_check
      _
    $region3: #{bert_layer.1} parent=1 // pred_check_branch
      %21 = sbr.rel (0) target = $region5
    $region4: #{bert_layer.1} parent=1 // pred_region
      _
    $region5: #{bert_layer.1} parent=1 // pred_fallthru
      _
    // Predicated region
    $region6: #{bert_layer.1} parent=1 // pred_check
      _
    $region7: #{bert_layer.1} parent=1 // pred_check_branch
      %23 = sbr.rel (0) target = $region9
    $region8: #{bert_layer.1} parent=1 // pred_region
      _
    $region9: #{bert_layer.1} parent=1 // pred_fallthru
      _
    // Predicated region
    $region10: #{bert_layer.1} parent=1 // pred_check
      _
    $region11: #{bert_layer.1} parent=1 // pred_check_branch
      %25 = sbr.rel (0) target = $region13
    $region12: #{bert_layer.1} parent=1 // pred_region
      _
    $region13: #{bert_layer.1} parent=1 // pred_fallthru
      _
    // Predicated region
    $region14: #{bert_layer.1} parent=1 // pred_check
      _
    $region15: #{bert_layer.1} parent=1 // pred_check_branch
      %27 = sbr.rel (0) target = $region17
    $region16: #{bert_layer.1} parent=1 // pred_region
      _
    $region17: #{bert_layer.1} parent=1 // pred_fallthru
      _
    // Predicated region
    $region18: #{bert_layer.1} parent=1 // pred_check
      _
    $region19: #{bert_layer.1} parent=1 // pred_check_branch
      %29 = sbr.rel (0) target = $region21
    $region20: #{bert_layer.1} parent=1 // pred_region
      _
    $region21: #{bert_layer.1} parent=1 // pred_fallthru
      _
    // Predicated region
    $region22: #{bert_layer.1} parent=1 // pred_check
      _
    $region23: #{bert_layer.1} parent=1 // pred_check_branch
      %31 = sbr.rel (0) target = $region25
    $region24: #{bert_layer.1} parent=1 // pred_region
      _
    $region25: #{bert_layer.1} parent=1 // pred_fallthru
      _
    // Predicated region
    $region26: #{bert_layer.1} parent=1 // pred_check
      _
    $region27: #{bert_layer.1} parent=1 // pred_check_branch
      %33 = sbr.rel (0) target = $region29
    $region28: #{bert_layer.1} parent=1 // pred_region
      _
    $region29: #{bert_layer.1} parent=1 // pred_fallthru
      _
    // Predicated region
    $region30: #{bert_layer.1} parent=1 // pred_check
      _
    $region31: #{bert_layer.1} parent=1 // pred_check_branch
      %35 = sbr.rel (0) target = $region33
    $region32: #{bert_layer.1} parent=1 // pred_region
      _
    $region33: #{bert_layer.1} parent=1 // pred_fallthru
      _
    // Predicated region
    $region34: #{bert_layer.1} parent=1 // pred_check
      _
    $region35: #{bert_layer.1} parent=1 // pred_check_branch
      %37 = sbr.rel (0) target = $region37
    $region36: #{bert_layer.1} parent=1 // pred_region
      _
    $region37: #{bert_layer.1} parent=1 // pred_fallthru
      _
    // Predicated region
    $region38: #{bert_layer.1} parent=1 // pred_check
      _
    $region39: #{bert_layer.1} parent=1 // pred_check_branch
      %39 = sbr.rel (0) target = $region41
    $region40: #{bert_layer.1} parent=1 // pred_region
      _
    $region41: #{bert_layer.1} parent=1 // pred_fallthru
      _
    // Predicated region
    $region42: #{bert_layer.1} parent=1 // pred_check
      _
    $region43: #{bert_layer.1} parent=1 // pred_check_branch
      %41 = sbr.rel (0) target = $region45
    $region44: #{bert_layer.1} parent=1 // pred_region
      _
    $region45: #{bert_layer.1} parent=1 // pred_fallthru
      _
    // Predicated region
    $region46: #{bert_layer.1} parent=1 // pred_check
      _
    $region47: #{bert_layer.1} parent=1 // pred_check_branch
      %43 = sbr.rel (0) target = $region49
    $region48: #{bert_layer.1} parent=1 // pred_region
      _
    $region49: #{bert_layer.1} parent=1 // pred_fallthru
      _
    // Predicated region
    $region50: #{bert_layer.1} parent=1 // pred_check
      _
    $region51: #{bert_layer.1} parent=1 // pred_check_branch
      %45 = sbr.rel (0) target = $region53
    $region52: #{bert_layer.1} parent=1 // pred_region
      _
    $region53: #{bert_layer.1} parent=1 // pred_fallthru
      _
    // Predicated region
    $region54: #{bert_layer.1} parent=1 // pred_check
      _
    $region55: #{bert_layer.1} parent=1 // pred_check_branch
      %47 = sbr.rel (0) target = $region57
    $region56: #{bert_layer.1} parent=1 // pred_region
      _
    $region57: #{bert_layer.1} parent=1 // pred_fallthru
      _
    %v48 = vld [vmem:[%s0] sm:$0xff]
    %v49 = vld [vmem:[%s0 + $0x8] sm:$0xff]
    %v50 = vld [vmem:[%s2] sm:$0xff]
    %v51 = vld [vmem:[%s2 + $0x8] sm:$0xff]
    %v52 = vld [vmem:[%s2 + $0x10] sm:$0xff]
    %v53 = vld [vmem:[%s2 + $0x18] sm:$0xff]
    %v54 = vld [vmem:[%s3] sm:$0x1]
    %v56 = vlaneseq
    %v57 = vshrl.u32 %v56, 7
    %v58 = vsub.s32 0, %v57
    %v59 = vrot.slane %v54, %v58
    %vm61 = vcmask 261120
    %v63 = vsel %vm61, %v48, 0
    %v66 = vsel %vm61, %v49, 0
    %68 = vmatprep.subr.mxu0 0.0
    %69 = vmatpush1.msra.mxu0 0.0
    %70 = vmatprep.subr.mxu0 0.0
    %71 = vmatpush1.msra.mxu0 0.0
    %72 = vmatprep.subr.mxu0 0.0
    %73 = vmatpush1.msra.mxu0 0.0
    %74 = vmatprep.subr.mxu0 0.0
    %75 = vmatpush1.msra.mxu0 0.0
    %76 = vmatprep.subr.mxu0 0.0
    %77 = vmatpush1.msra.mxu0 0.0
    %78 = vmatprep.subr.mxu0 0.0
    %79 = vmatpush1.msra.mxu0 0.0
    %80 = vmatprep.subr.mxu0 0.0
    %81 = vmatpush1.msra.mxu0 0.0
    %82 = vmatprep.subr.mxu0 0.0
    %83 = vmatpush1.msra.mxu0 0.0
    %84 = vmatprep.subr.mxu0 0.0
    %85 = vmatpush1.msra.mxu0 0.0
    %86 = vmatprep.subr.mxu0 0.0
    %87 = vmatpush1.msra.mxu0 0.0
    %88 = vmatprep.subr.mxu0 0.0
    %89 = vmatpush1.msra.mxu0 0.0
    %90 = vmatprep.subr.mxu0 0.0
    %91 = vmatpush1.msra.mxu0 0.0
    %92 = vmatprep.subr.mxu0 0.0
    %93 = vmatpush1.msra.mxu0 %v53
    %94 = vmatprep.subr.mxu0 0.0
    %95 = vmatpush1.msra.mxu0 %v52
    %96 = vmatprep.subr.mxu0 0.0
    %97 = vmatpush1.msra.mxu0 %v51
    %98 = vmatprep.subr.mxu0 0.0
    %99 = vmatpush1.msra.mxu0 %v50
    %100 = vmatprep.subr.mxu0 0.0
    %101 = vmatpush2.msra.mxu0 0.0
    %102 = vmatprep.subr.mxu0 0.0
    %103 = vmatpush2.msra.mxu0 0.0
    %104 = vmatprep.subr.mxu0 0.0
    %105 = vmatpush2.msra.mxu0 0.0
    %106 = vmatprep.subr.mxu0 0.0
    %107 = vmatpush2.msra.mxu0 0.0
    %108 = vmatprep.subr.mxu0 0.0
    %109 = vmatpush2.msra.mxu0 0.0
    %110 = vmatprep.subr.mxu0 0.0
    %111 = vmatpush2.msra.mxu0 0.0
    %112 = vmatprep.subr.mxu0 0.0
    %113 = vmatpush2.msra.mxu0 0.0
    %114 = vmatprep.subr.mxu0 0.0
    %115 = vmatpush2.msra.mxu0 0.0
    %116 = vmatprep.subr.mxu0 0.0
    %117 = vmatpush2.msra.mxu0 0.0
    %118 = vmatprep.subr.mxu0 0.0
    %119 = vmatpush2.msra.mxu0 0.0
    %120 = vmatprep.subr.mxu0 0.0
    %121 = vmatpush2.msra.mxu0 0.0
    %122 = vmatprep.subr.mxu0 0.0
    %123 = vmatpush2.msra.mxu0 0.0
    %124 = vmatprep.subr.mxu0 0.0
    %125 = vmatpush2.msra.mxu0 0.0
    %126 = vmatprep.subr.mxu0 0.0
    %127 = vmatpush2.msra.mxu0 0.0
    %128 = vmatprep.subr.mxu0 0.0
    %129 = vmatpush2.msra.mxu0 0.0
    %130 = vmatprep.subr.mxu0 0.0
    %131 = vmatpush2.msra.mxu0 0.0
    %132 = vmatprep.mubr.f32.mxu0 0.0
    %133 = vmatmul.mubr.f32.gmra.mxu0 %v63
    %v134 = vpop.f32.mrf.mxu0
    %v135 = vadd.f32 %v59, %v134
    %v136 = vpop.f32.mrf.mxu0
    %137 = vmatprep.mubr.f32.mxu0 0.0
    %138 = vmatmul.mubr.f32.gmra.mxu0 %v66
    %v139 = vpop.f32.mrf.mxu0
    %v140 = vadd.f32 %v59, %v139
    %v141 = vpop.f32.mrf.mxu0
    %142 = vdwg.mxu0
    %145 = vrot.lane.b32.xlu0 %v135, 80
    %v146 = vpop.permute.xlu0 %145
    %147 = vrot.lane.b32.xlu0 %v140, 80
    %v148 = vpop.permute.xlu0 %147
    %149 = vrot.lane.b32.xlu0 %v135, 112
    %v150 = vpop.permute.xlu0 %149
    %151 = vrot.lane.b32.xlu0 %v140, 112
    %v152 = vpop.permute.xlu0 %151
    %153 = vrot.lane.b32.xlu0 %v146, 112
    %v154 = vpop.permute.xlu0 %153
    %155 = vrot.lane.b32.xlu0 %v148, 112
    %v156 = vpop.permute.xlu0 %155
    %vm157 = vcmask 130048
    %v158 = vsel %vm157, %v135, 0
    %v160 = vsel %vm157, %v140, 0
    %v162 = vsel %vm157, %v146, 0
    %v164 = vsel %vm157, %v148, 0
    %v166 = vsel %vm157, %v150, 0
    %v168 = vsel %vm157, %v152, 0
    %v170 = vsel %vm157, %v154, 0
    %v172 = vsel %vm157, %v156, 0
    %174 = vmatprep.subr.mxu0 0.0
    %175 = vmatpush1.xpose.msra.mxu0 0.0
    %176 = vmatprep.subr.mxu0 0.0
    %177 = vmatpush1.xpose.msra.mxu0 0.0
    %178 = vmatprep.subr.mxu0 0.0
    %179 = vmatpush1.xpose.msra.mxu0 0.0
    %180 = vmatprep.subr.mxu0 0.0
    %181 = vmatpush1.xpose.msra.mxu0 0.0
    %182 = vmatprep.subr.mxu0 0.0
    %183 = vmatpush1.xpose.msra.mxu0 0.0
    %184 = vmatprep.subr.mxu0 0.0
    %185 = vmatpush1.xpose.msra.mxu0 0.0
    %186 = vmatprep.subr.mxu0 0.0
    %187 = vmatpush1.xpose.msra.mxu0 0.0
    %188 = vmatprep.subr.mxu0 0.0
    %189 = vmatpush1.xpose.msra.mxu0 0.0
    %190 = vmatprep.subr.mxu0 0.0
    %191 = vmatpush1.xpose.msra.mxu0 0.0
    %192 = vmatprep.subr.mxu0 0.0
    %193 = vmatpush1.xpose.msra.mxu0 0.0
    %194 = vmatprep.subr.mxu0 0.0
    %195 = vmatpush1.xpose.msra.mxu0 0.0
    %196 = vmatprep.subr.mxu0 0.0
    %197 = vmatpush1.xpose.msra.mxu0 0.0
    %198 = vmatprep.subr.mxu0 0.0
    %199 = vmatpush1.xpose.msra.mxu0 %v172
    %200 = vmatprep.subr.mxu0 0.0
    %201 = vmatpush1.xpose.msra.mxu0 %v170
    %202 = vmatprep.subr.mxu0 0.0
    %203 = vmatpush1.xpose.msra.mxu0 %v168
    %204 = vmatprep.subr.mxu0 0.0
    %205 = vmatpush1.xpose.msra.mxu0 %v166
    %206 = vmatprep.subr.mxu0 0.0
    %207 = vmatpush2.xpose.msra.mxu0 0.0
    %208 = vmatprep.subr.mxu0 0.0
    %209 = vmatpush2.xpose.msra.mxu0 0.0
    %210 = vmatprep.subr.mxu0 0.0
    %211 = vmatpush2.xpose.msra.mxu0 0.0
    %212 = vmatprep.subr.mxu0 0.0
    %213 = vmatpush2.xpose.msra.mxu0 0.0
    %214 = vmatprep.subr.mxu0 0.0
    %215 = vmatpush2.xpose.msra.mxu0 0.0
    %216 = vmatprep.subr.mxu0 0.0
    %217 = vmatpush2.xpose.msra.mxu0 0.0
    %218 = vmatprep.subr.mxu0 0.0
    %219 = vmatpush2.xpose.msra.mxu0 0.0
    %220 = vmatprep.subr.mxu0 0.0
    %221 = vmatpush2.xpose.msra.mxu0 0.0
    %222 = vmatprep.subr.mxu0 0.0
    %223 = vmatpush2.xpose.msra.mxu0 0.0
    %224 = vmatprep.subr.mxu0 0.0
    %225 = vmatpush2.xpose.msra.mxu0 0.0
    %226 = vmatprep.subr.mxu0 0.0
    %227 = vmatpush2.xpose.msra.mxu0 0.0
    %228 = vmatprep.subr.mxu0 0.0
    %229 = vmatpush2.xpose.msra.mxu0 0.0
    %230 = vmatprep.subr.mxu0 0.0
    %231 = vmatpush2.xpose.msra.mxu0 0.0
    %232 = vmatprep.subr.mxu0 0.0
    %233 = vmatpush2.xpose.msra.mxu0 0.0
    %234 = vmatprep.subr.mxu0 0.0
    %235 = vmatpush2.xpose.msra.mxu0 0.0
    %236 = vmatprep.subr.mxu0 0.0
    %237 = vmatpush2.xpose.msra.mxu0 0.0
    %238 = vmatprep.mubr.f32.mxu0 0.0
    %239 = vmatmul.mubr.f32.gmra.mxu0 %v158
    %v240 = vpop.f32.mrf.mxu0
    %v241 = vadd.f32 0.0, %v240
    %v242 = vpop.f32.mrf.mxu0
    %243 = vmatprep.mubr.f32.mxu0 0.0
    %244 = vmatmul.mubr.f32.gmra.mxu0 %v160
    %v245 = vpop.f32.mrf.mxu0
    %v246 = vadd.f32 0.0, %v245
    %v247 = vpop.f32.mrf.mxu0
    %248 = vmatprep.mubr.f32.mxu0 0.0
    %249 = vmatmul.mubr.f32.gmra.mxu0 %v162
    %v250 = vpop.f32.mrf.mxu0
    %v251 = vadd.f32 0.0, %v250
    %v252 = vpop.f32.mrf.mxu0
    %253 = vmatprep.mubr.f32.mxu0 0.0
    %254 = vmatmul.mubr.f32.gmra.mxu0 %v164
    %v255 = vpop.f32.mrf.mxu0
    %v256 = vadd.f32 0.0, %v255
    %v257 = vpop.f32.mrf.mxu0
    %258 = vdwg.mxu0
    %v259 = vmul.f32 %v241, 0.25
    %v260 = vmul.f32 %v246, 0.25
    %v261 = vmul.f32 %v251, 0.25
    %v262 = vmul.f32 %v256, 0.25
    %v263 = vld [vmem:[%s1] sm:$0xff]
    %v264 = vld [vmem:[%s1 + $0x8] sm:$0xff]
    %v265 = vld [vmem:[%s1 + $0x10] sm:$0xff]
    %v266 = vld [vmem:[%s1 + $0x18] sm:$0xff]
    %v267 = vadd.f32 %v259, %v263
    %v268 = vadd.f32 %v260, %v264
    %v269 = vadd.f32 %v261, %v265
    %v270 = vadd.f32 %v262, %v266
    %v271 = vsel %vm61, %v267, -inf
    %272 = vmax.xlane.f32.xlu0 %v271
    %v273 = vpop.xlane.xlu0 %272
    %v274 = vsel %vm61, %v268, -inf
    %275 = vmax.xlane.f32.xlu0 %v274
    %v276 = vpop.xlane.xlu0 %275
    %v277 = vsel %vm61, %v269, -inf
    %278 = vmax.xlane.f32.xlu0 %v277
    %v279 = vpop.xlane.xlu0 %278
    %v280 = vsel %vm61, %v270, -inf
    %281 = vmax.xlane.f32.xlu0 %v280
    %v282 = vpop.xlane.xlu0 %281
    %v283 = vsub.f32 %v267, %v273
    %v284 = vsub.f32 %v268, %v276
    %v285 = vsub.f32 %v269, %v279
    %v286 = vsub.f32 %v270, %v282
    %v287 = vmul.f32 %v283, 1.442695
    %v288 = vpow.pop %v287
    %v289 = vmul.f32 %v284, 1.442695
    %v290 = vpow.pop %v289
    %v291 = vmul.f32 %v285, 1.442695
    %v292 = vpow.pop %v291
    %v293 = vmul.f32 %v286, 1.442695
    %v294 = vpow.pop %v293
    %v295 = vsel %vm61, %v288, 0.0
    %296 = vadd.xlane.f32.xlu0 %v295
    %v297 = vpop.xlane.xlu0 %296
    %v298 = vsel %vm61, %v290, 0.0
    %299 = vadd.xlane.f32.xlu0 %v298
    %v300 = vpop.xlane.xlu0 %299
    %v301 = vsel %vm61, %v292, 0.0
    %302 = vadd.xlane.f32.xlu0 %v301
    %v303 = vpop.xlane.xlu0 %302
    %v304 = vsel %vm61, %v294, 0.0
    %305 = vadd.xlane.f32.xlu0 %v304
    %v306 = vpop.xlane.xlu0 %305
    %v307 = vrcp.pop %v297
    %v308 = vrcp.pop %v300
    %v309 = vrcp.pop %v303
    %v310 = vrcp.pop %v306
    %v311 = vmul.f32 %v288, %v307
    %v312 = vmul.f32 %v290, %v308
    %v313 = vmul.f32 %v292, %v309
    %v314 = vmul.f32 %v294, %v310
    %315 = vrot.lane.b32.xlu0 %v135, 96
    %v316 = vpop.permute.xlu0 %315
    %317 = vrot.lane.b32.xlu0 %v140, 96
    %v318 = vpop.permute.xlu0 %317
    %319 = vrot.lane.b32.xlu0 %v146, 96
    %v320 = vpop.permute.xlu0 %319
    %321 = vrot.lane.b32.xlu0 %v148, 96
    %v322 = vpop.permute.xlu0 %321
    %v328 = vsel %vm61, %v311, 0
    %v331 = vsel %vm61, %v312, 0
    %v334 = vsel %vm61, %v313, 0
    %v337 = vsel %vm61, %v314, 0
    %339 = vmatprep.subr.mxu0 0.0
    %340 = vmatpush1.msra.mxu0 0.0
    %341 = vmatprep.subr.mxu0 0.0
    %342 = vmatpush1.msra.mxu0 0.0
    %343 = vmatprep.subr.mxu0 0.0
    %344 = vmatpush1.msra.mxu0 0.0
    %345 = vmatprep.subr.mxu0 0.0
    %346 = vmatpush1.msra.mxu0 0.0
    %347 = vmatprep.subr.mxu0 0.0
    %348 = vmatpush1.msra.mxu0 0.0
    %349 = vmatprep.subr.mxu0 0.0
    %350 = vmatpush1.msra.mxu0 0.0
    %351 = vmatprep.subr.mxu0 0.0
    %352 = vmatpush1.msra.mxu0 0.0
    %353 = vmatprep.subr.mxu0 0.0
    %354 = vmatpush1.msra.mxu0 0.0
    %355 = vmatprep.subr.mxu0 0.0
    %356 = vmatpush1.msra.mxu0 0.0
    %357 = vmatprep.subr.mxu0 0.0
    %358 = vmatpush1.msra.mxu0 0.0
    %359 = vmatprep.subr.mxu0 0.0
    %360 = vmatpush1.msra.mxu0 0.0
    %361 = vmatprep.subr.mxu0 0.0
    %362 = vmatpush1.msra.mxu0 0.0
    %363 = vmatprep.subr.mxu0 0.0
    %364 = vmatpush1.msra.mxu0 %v322
    %365 = vmatprep.subr.mxu0 0.0
    %366 = vmatpush1.msra.mxu0 %v320
    %367 = vmatprep.subr.mxu0 0.0
    %368 = vmatpush1.msra.mxu0 %v318
    %369 = vmatprep.subr.mxu0 0.0
    %370 = vmatpush1.msra.mxu0 %v316
    %371 = vmatprep.subr.mxu0 0.0
    %372 = vmatpush2.msra.mxu0 0.0
    %373 = vmatprep.subr.mxu0 0.0
    %374 = vmatpush2.msra.mxu0 0.0
    %375 = vmatprep.subr.mxu0 0.0
    %376 = vmatpush2.msra.mxu0 0.0
    %377 = vmatprep.subr.mxu0 0.0
    %378 = vmatpush2.msra.mxu0 0.0
    %379 = vmatprep.subr.mxu0 0.0
    %380 = vmatpush2.msra.mxu0 0.0
    %381 = vmatprep.subr.mxu0 0.0
    %382 = vmatpush2.msra.mxu0 0.0
    %383 = vmatprep.subr.mxu0 0.0
    %384 = vmatpush2.msra.mxu0 0.0
    %385 = vmatprep.subr.mxu0 0.0
    %386 = vmatpush2.msra.mxu0 0.0
    %387 = vmatprep.subr.mxu0 0.0
    %388 = vmatpush2.msra.mxu0 0.0
    %389 = vmatprep.subr.mxu0 0.0
    %390 = vmatpush2.msra.mxu0 0.0
    %391 = vmatprep.subr.mxu0 0.0
    %392 = vmatpush2.msra.mxu0 0.0
    %393 = vmatprep.subr.mxu0 0.0
    %394 = vmatpush2.msra.mxu0 0.0
    %395 = vmatprep.subr.mxu0 0.0
    %396 = vmatpush2.msra.mxu0 0.0
    %397 = vmatprep.subr.mxu0 0.0
    %398 = vmatpush2.msra.mxu0 0.0
    %399 = vmatprep.subr.mxu0 0.0
    %400 = vmatpush2.msra.mxu0 0.0
    %401 = vmatprep.subr.mxu0 0.0
    %402 = vmatpush2.msra.mxu0 0.0
    %403 = vmatprep.mubr.f32.mxu0 0.0
    %404 = vmatmul.mubr.f32.gmra.mxu0 %v328
    %v405 = vpop.f32.mrf.mxu0
    %v406 = vadd.f32 0.0, %v405
    %v407 = vpop.f32.mrf.mxu0
    %408 = vmatprep.mubr.f32.mxu0 0.0
    %409 = vmatmul.mubr.f32.gmra.mxu0 %v331
    %v410 = vpop.f32.mrf.mxu0
    %v411 = vadd.f32 0.0, %v410
    %v412 = vpop.f32.mrf.mxu0
    %413 = vmatprep.mubr.f32.mxu0 0.0
    %414 = vmatmul.mubr.f32.gmra.mxu0 %v334
    %v415 = vpop.f32.mrf.mxu0
    %v416 = vadd.f32 0.0, %v415
    %v417 = vpop.f32.mrf.mxu0
    %418 = vmatprep.mubr.f32.mxu0 0.0
    %419 = vmatmul.mubr.f32.gmra.mxu0 %v337
    %v420 = vpop.f32.mrf.mxu0
    %v421 = vadd.f32 0.0, %v420
    %v422 = vpop.f32.mrf.mxu0
    %423 = vdwg.mxu0
    %v424 = vld [vmem:[%s5] sm:$0x1]
    %v426 = vlaneseq
    %v427 = vshrl.u32 %v426, 7
    %v428 = vsub.s32 0, %v427
    %v429 = vrot.slane %v424, %v428
    %v431 = vadd.f32 %v48, %v429
    %v432 = vadd.f32 %v49, %v429
    %v433 = vld [vmem:[%s4] sm:$0xff]
    %v434 = vld [vmem:[%s4 + $0x8] sm:$0xff]
    %v436 = vsel %vm157, %v406, 0
    %v439 = vsel %vm157, %v411, 0
    %441 = vmatprep.subr.mxu0 0.0
    %442 = vmatpush1.msra.mxu0 0.0
    %443 = vmatprep.subr.mxu0 0.0
    %444 = vmatpush1.msra.mxu0 0.0
    %445 = vmatprep.subr.mxu0 0.0
    %446 = vmatpush1.msra.mxu0 0.0
    %447 = vmatprep.subr.mxu0 0.0
    %448 = vmatpush1.msra.mxu0 0.0
    %449 = vmatprep.subr.mxu0 0.0
    %450 = vmatpush1.msra.mxu0 0.0
    %451 = vmatprep.subr.mxu0 0.0
    %452 = vmatpush1.msra.mxu0 0.0
    %453 = vmatprep.subr.mxu0 0.0
    %454 = vmatpush1.msra.mxu0 0.0
    %455 = vmatprep.subr.mxu0 0.0
    %456 = vmatpush1.msra.mxu0 0.0
    %457 = vmatprep.subr.mxu0 0.0
    %458 = vmatpush1.msra.mxu0 0.0
    %459 = vmatprep.subr.mxu0 0.0
    %460 = vmatpush1.msra.mxu0 0.0
    %461 = vmatprep.subr.mxu0 0.0
    %462 = vmatpush1.msra.mxu0 0.0
    %463 = vmatprep.subr.mxu0 0.0
    %464 = vmatpush1.msra.mxu0 0.0
    %465 = vmatprep.subr.mxu0 0.0
    %466 = vmatpush1.msra.mxu0 0.0
    %467 = vmatprep.subr.mxu0 0.0
    %468 = vmatpush1.msra.mxu0 0.0
    %469 = vmatprep.subr.mxu0 0.0
    %470 = vmatpush1.msra.mxu0 %v434
    %471 = vmatprep.subr.mxu0 0.0
    %472 = vmatpush1.msra.mxu0 %v433
    %473 = vmatprep.subr.mxu0 0.0
    %474 = vmatpush2.msra.mxu0 0.0
    %475 = vmatprep.subr.mxu0 0.0
    %476 = vmatpush2.msra.mxu0 0.0
    %477 = vmatprep.subr.mxu0 0.0
    %478 = vmatpush2.msra.mxu0 0.0
    %479 = vmatprep.subr.mxu0 0.0
    %480 = vmatpush2.msra.mxu0 0.0
    %481 = vmatprep.subr.mxu0 0.0
    %482 = vmatpush2.msra.mxu0 0.0
    %483 = vmatprep.subr.mxu0 0.0
    %484 = vmatpush2.msra.mxu0 0.0
    %485 = vmatprep.subr.mxu0 0.0
    %486 = vmatpush2.msra.mxu0 0.0
    %487 = vmatprep.subr.mxu0 0.0
    %488 = vmatpush2.msra.mxu0 0.0
    %489 = vmatprep.subr.mxu0 0.0
    %490 = vmatpush2.msra.mxu0 0.0
    %491 = vmatprep.subr.mxu0 0.0
    %492 = vmatpush2.msra.mxu0 0.0
    %493 = vmatprep.subr.mxu0 0.0
    %494 = vmatpush2.msra.mxu0 0.0
    %495 = vmatprep.subr.mxu0 0.0
    %496 = vmatpush2.msra.mxu0 0.0
    %497 = vmatprep.subr.mxu0 0.0
    %498 = vmatpush2.msra.mxu0 0.0
    %499 = vmatprep.subr.mxu0 0.0
    %500 = vmatpush2.msra.mxu0 0.0
    %501 = vmatprep.subr.mxu0 0.0
    %502 = vmatpush2.msra.mxu0 0.0
    %503 = vmatprep.subr.mxu0 0.0
    %504 = vmatpush2.msra.mxu0 0.0
    %505 = vmatprep.mubr.f32.mxu0 0.0
    %506 = vmatmul.mubr.f32.gmra.mxu0 %v436
    %v507 = vpop.f32.mrf.mxu0
    %v508 = vadd.f32 0.0, %v507
    %v509 = vpop.f32.mrf.mxu0
    %510 = vmatprep.mubr.f32.mxu0 0.0
    %511 = vmatmul.mubr.f32.gmra.mxu0 %v439
    %v512 = vpop.f32.mrf.mxu0
    %v513 = vadd.f32 0.0, %v512
    %v514 = vpop.f32.mrf.mxu0
    %515 = vdwg.mxu0
    %v516 = vadd.f32 %v431, %v508
    %v517 = vadd.f32 %v432, %v513
    %s518 = scalar_lea.vmem %s4, 16
    %v519 = vld [vmem:[%s518] sm:$0xff]
    %v520 = vld [vmem:[%s518 + $0x8] sm:$0xff]
    %v522 = vsel %vm157, %v416, 0
    %v525 = vsel %vm157, %v421, 0
    %527 = vmatprep.subr.mxu0 0.0
    %528 = vmatpush1.msra.mxu0 0.0
    %529 = vmatprep.subr.mxu0 0.0
    %530 = vmatpush1.msra.mxu0 0.0
    %531 = vmatprep.subr.mxu0 0.0
    %532 = vmatpush1.msra.mxu0 0.0
    %533 = vmatprep.subr.mxu0 0.0
    %534 = vmatpush1.msra.mxu0 0.0
    %535 = vmatprep.subr.mxu0 0.0
    %536 = vmatpush1.msra.mxu0 0.0
    %537 = vmatprep.subr.mxu0 0.0
    %538 = vmatpush1.msra.mxu0 0.0
    %539 = vmatprep.subr.mxu0 0.0
    %540 = vmatpush1.msra.mxu0 0.0
    %541 = vmatprep.subr.mxu0 0.0
    %542 = vmatpush1.msra.mxu0 0.0
    %543 = vmatprep.subr.mxu0 0.0
    %544 = vmatpush1.msra.mxu0 0.0
    %545 = vmatprep.subr.mxu0 0.0
    %546 = vmatpush1.msra.mxu0 0.0
    %547 = vmatprep.subr.mxu0 0.0
    %548 = vmatpush1.msra.mxu0 0.0
    %549 = vmatprep.subr.mxu0 0.0
    %550 = vmatpush1.msra.mxu0 0.0
    %551 = vmatprep.subr.mxu0 0.0
    %552 = vmatpush1.msra.mxu0 0.0
    %553 = vmatprep.subr.mxu0 0.0
    %554 = vmatpush1.msra.mxu0 0.0
    %555 = vmatprep.subr.mxu0 0.0
    %556 = vmatpush1.msra.mxu0 %v520
    %557 = vmatprep.subr.mxu0 0.0
    %558 = vmatpush1.msra.mxu0 %v519
    %559 = vmatprep.subr.mxu0 0.0
    %560 = vmatpush2.msra.mxu0 0.0
    %561 = vmatprep.subr.mxu0 0.0
    %562 = vmatpush2.msra.mxu0 0.0
    %563 = vmatprep.subr.mxu0 0.0
    %564 = vmatpush2.msra.mxu0 0.0
    %565 = vmatprep.subr.mxu0 0.0
    %566 = vmatpush2.msra.mxu0 0.0
    %567 = vmatprep.subr.mxu0 0.0
    %568 = vmatpush2.msra.mxu0 0.0
    %569 = vmatprep.subr.mxu0 0.0
    %570 = vmatpush2.msra.mxu0 0.0
    %571 = vmatprep.subr.mxu0 0.0
    %572 = vmatpush2.msra.mxu0 0.0
    %573 = vmatprep.subr.mxu0 0.0
    %574 = vmatpush2.msra.mxu0 0.0
    %575 = vmatprep.subr.mxu0 0.0
    %576 = vmatpush2.msra.mxu0 0.0
    %577 = vmatprep.subr.mxu0 0.0
    %578 = vmatpush2.msra.mxu0 0.0
    %579 = vmatprep.subr.mxu0 0.0
    %580 = vmatpush2.msra.mxu0 0.0
    %581 = vmatprep.subr.mxu0 0.0
    %582 = vmatpush2.msra.mxu0 0.0
    %583 = vmatprep.subr.mxu0 0.0
    %584 = vmatpush2.msra.mxu0 0.0
    %585 = vmatprep.subr.mxu0 0.0
    %586 = vmatpush2.msra.mxu0 0.0
    %587 = vmatprep.subr.mxu0 0.0
    %588 = vmatpush2.msra.mxu0 0.0
    %589 = vmatprep.subr.mxu0 0.0
    %590 = vmatpush2.msra.mxu0 0.0
    %591 = vmatprep.mubr.f32.mxu0 0.0
    %592 = vmatmul.mubr.f32.gmra.mxu0 %v522
    %v593 = vpop.f32.mrf.mxu0
    %v594 = vadd.f32 0.0, %v593
    %v595 = vpop.f32.mrf.mxu0
    %596 = vmatprep.mubr.f32.mxu0 0.0
    %597 = vmatmul.mubr.f32.gmra.mxu0 %v525
    %v598 = vpop.f32.mrf.mxu0
    %v599 = vadd.f32 0.0, %v598
    %v600 = vpop.f32.mrf.mxu0
    %601 = vdwg.mxu0
    %v602 = vadd.f32 %v516, %v594
    %v603 = vadd.f32 %v517, %v599
    %v604 = vld [vmem:[%s6] sm:$0x1]
    %v605 = vld [vmem:[%s7] sm:$0x1]
    %v606 = vsel %vm61, %v602, 0.0
    %607 = vadd.xlane.f32.xlu0 %v606
    %v608 = vpop.xlane.xlu0 %607
    %v609 = vsel %vm61, %v603, 0.0
    %610 = vadd.xlane.f32.xlu0 %v609
    %v611 = vpop.xlane.xlu0 %610
    %v612 = vrcp.pop 32.0
    %v613 = vmul.f32 %v608, %v612
    %v614 = vmul.f32 %v611, %v612
    %v615 = vmul.f32 %v602, %v602
    %v616 = vmul.f32 %v603, %v603
    %v617 = vsel %vm61, %v615, 0.0
    %618 = vadd.xlane.f32.xlu0 %v617
    %v619 = vpop.xlane.xlu0 %618
    %v620 = vsel %vm61, %v616, 0.0
    %621 = vadd.xlane.f32.xlu0 %v620
    %v622 = vpop.xlane.xlu0 %621
    %v623 = vmul.f32 %v619, %v612
    %v624 = vmul.f32 %v622, %v612
    %v625 = vmul.f32 %v613, %v613
    %v626 = vmul.f32 %v614, %v614
    %v627 = vsub.f32 %v623, %v625
    %v628 = vsub.f32 %v624, %v626
    %v629 = vsub.f32 %v602, %v613
    %v630 = vsub.f32 %v603, %v614
    %v631 = vadd.f32 %v627, 1e-12
    %v632 = vadd.f32 %v628, 1e-12
    %v633 = vrsqrt.pop %v631
    %v634 = vrsqrt.pop %v632
    %v635 = vmul.f32 %v629, %v633
    %v636 = vmul.f32 %v630, %v634
    %v638 = vlaneseq
    %v639 = vshrl.u32 %v638, 7
    %v640 = vsub.s32 0, %v639
    %v641 = vrot.slane %v604, %v640
    %v643 = vmul.f32 %v635, %v641
    %v644 = vmul.f32 %v636, %v641
    %v646 = vlaneseq
    %v647 = vshrl.u32 %v646, 7
    %v648 = vsub.s32 0, %v647
    %v649 = vrot.slane %v605, %v648
    %v651 = vadd.f32 %v643, %v649
    %v652 = vadd.f32 %v644, %v649
    %v653 = vld [vmem:[%s8] sm:$0xff]
    %v654 = vld [vmem:[%s8 + $0x8] sm:$0xff]
    %v655 = vld [vmem:[%s8 + $0x10] sm:$0xff]
    %v656 = vld [vmem:[%s8 + $0x18] sm:$0xff]
    %v657 = vld [vmem:[%s9] sm:$0x1]
    %v659 = vlaneseq
    %v660 = vshrl.u32 %v659, 7
    %v661 = vsub.s32 0, %v660
    %v662 = vrot.slane %v657, %v661
    %v665 = vsel %vm61, %v651, 0
    %v668 = vsel %vm61, %v652, 0
    %670 = vmatprep.subr.mxu0 0.0
    %671 = vmatpush1.msra.mxu0 0.0
    %672 = vmatprep.subr.mxu0 0.0
    %673 = vmatpush1.msra.mxu0 0.0
    %674 = vmatprep.subr.mxu0 0.0
    %675 = vmatpush1.msra.mxu0 0.0
    %676 = vmatprep.subr.mxu0 0.0
    %677 = vmatpush1.msra.mxu0 0.0
    %678 = vmatprep.subr.mxu0 0.0
    %679 = vmatpush1.msra.mxu0 0.0
    %680 = vmatprep.subr.mxu0 0.0
    %681 = vmatpush1.msra.mxu0 0.0
    %682 = vmatprep.subr.mxu0 0.0
    %683 = vmatpush1.msra.mxu0 0.0
    %684 = vmatprep.subr.mxu0 0.0
    %685 = vmatpush1.msra.mxu0 0.0
    %686 = vmatprep.subr.mxu0 0.0
    %687 = vmatpush1.msra.mxu0 0.0
    %688 = vmatprep.subr.mxu0 0.0
    %689 = vmatpush1.msra.mxu0 0.0
    %690 = vmatprep.subr.mxu0 0.0
    %691 = vmatpush1.msra.mxu0 0.0
    %692 = vmatprep.subr.mxu0 0.0
    %693 = vmatpush1.msra.mxu0 0.0
    %694 = vmatprep.subr.mxu0 0.0
    %695 = vmatpush1.msra.mxu0 %v656
    %696 = vmatprep.subr.mxu0 0.0
    %697 = vmatpush1.msra.mxu0 %v655
    %698 = vmatprep.subr.mxu0 0.0
    %699 = vmatpush1.msra.mxu0 %v654
    %700 = vmatprep.subr.mxu0 0.0
    %701 = vmatpush1.msra.mxu0 %v653
    %702 = vmatprep.subr.mxu0 0.0
    %703 = vmatpush2.msra.mxu0 0.0
    %704 = vmatprep.subr.mxu0 0.0
    %705 = vmatpush2.msra.mxu0 0.0
    %706 = vmatprep.subr.mxu0 0.0
    %707 = vmatpush2.msra.mxu0 0.0
    %708 = vmatprep.subr.mxu0 0.0
    %709 = vmatpush2.msra.mxu0 0.0
    %710 = vmatprep.subr.mxu0 0.0
    %711 = vmatpush2.msra.mxu0 0.0
    %712 = vmatprep.subr.mxu0 0.0
    %713 = vmatpush2.msra.mxu0 0.0
    %714 = vmatprep.subr.mxu0 0.0
    %715 = vmatpush2.msra.mxu0 0.0
    %716 = vmatprep.subr.mxu0 0.0
    %717 = vmatpush2.msra.mxu0 0.0
    %718 = vmatprep.subr.mxu0 0.0
    %719 = vmatpush2.msra.mxu0 0.0
    %720 = vmatprep.subr.mxu0 0.0
    %721 = vmatpush2.msra.mxu0 0.0
    %722 = vmatprep.subr.mxu0 0.0
    %723 = vmatpush2.msra.mxu0 0.0
    %724 = vmatprep.subr.mxu0 0.0
    %725 = vmatpush2.msra.mxu0 0.0
    %726 = vmatprep.subr.mxu0 0.0
    %727 = vmatpush2.msra.mxu0 0.0
    %728 = vmatprep.subr.mxu0 0.0
    %729 = vmatpush2.msra.mxu0 0.0
    %730 = vmatprep.subr.mxu0 0.0
    %731 = vmatpush2.msra.mxu0 0.0
    %732 = vmatprep.subr.mxu0 0.0
    %733 = vmatpush2.msra.mxu0 0.0
    %734 = vmatprep.mubr.f32.mxu0 0.0
    %735 = vmatmul.mubr.f32.gmra.mxu0 %v665
    %v736 = vpop.f32.mrf.mxu0
    %v737 = vadd.f32 %v662, %v736
    %v738 = vpop.f32.mrf.mxu0
    %739 = vmatprep.mubr.f32.mxu0 0.0
    %740 = vmatmul.mubr.f32.gmra.mxu0 %v668
    %v741 = vpop.f32.mrf.mxu0
    %v742 = vadd.f32 %v662, %v741
    %v743 = vpop.f32.mrf.mxu0
    %744 = vdwg.mxu0
    %v745 = vmul.f32 %v737, 0.5
    %v746 = vmul.f32 %v742, 0.5
    %v747 = vmul.f32 %v737, 0.044715
    %v748 = vmul.f32 %v742, 0.044715
    %v749 = vmul.f32 %v747, %v737
    %v750 = vmul.f32 %v748, %v742
    %v751 = vmul.f32 %v749, %v737
    %v752 = vmul.f32 %v750, %v742
    %v753 = vadd.f32 %v737, %v751
    %v754 = vadd.f32 %v742, %v752
    %v755 = vmul.f32 %v753, 0.7978846
    %v756 = vmul.f32 %v754, 0.7978846
    %v757 = vtanh.pop %v755
    %v758 = vtanh.pop %v756
    %v759 = vadd.f32 %v757, 1.0
    %v760 = vadd.f32 %v758, 1.0
    %v761 = vmul.f32 %v745, %v759
    %v762 = vmul.f32 %v746, %v760
    %v763 = vld [vmem:[%s10] sm:$0xff]
    %v764 = vld [vmem:[%s10 + $0x8] sm:$0xff]
    %v765 = vld [vmem:[%s10 + $0x10] sm:$0xff]
    %v766 = vld [vmem:[%s10 + $0x18] sm:$0xff]
    %v767 = vld [vmem:[%s10 + $0x20] sm:$0xff]
    %v768 = vld [vmem:[%s10 + $0x28] sm:$0xff]
    %v769 = vld [vmem:[%s10 + $0x30] sm:$0xff]
    %v770 = vld [vmem:[%s10 + $0x38] sm:$0xff]
    %v771 = vld [vmem:[%s10 + $0x40] sm:$0xff]
    %v772 = vld [vmem:[%s10 + $0x48] sm:$0xff]
    %v773 = vld [vmem:[%s10 + $0x50] sm:$0xff]
    %v774 = vld [vmem:[%s10 + $0x58] sm:$0xff]
    %v775 = vld [vmem:[%s10 + $0x60] sm:$0xff]
    %v776 = vld [vmem:[%s10 + $0x68] sm:$0xff]
    %v777 = vld [vmem:[%s10 + $0x70] sm:$0xff]
    %v778 = vld [vmem:[%s10 + $0x78] sm:$0xff]
    %v779 = vld [vmem:[%s11] sm:$0x1]
    %v781 = vlaneseq
    %v782 = vshrl.u32 %v781, 7
    %v783 = vsub.s32 0, %v782
    %v784 = vrot.slane %v779, %v783
    %786 = vmatprep.subr.mxu0 0.0
    %787 = vmatpush1.msra.mxu0 %v778
    %788 = vmatprep.subr.mxu0 0.0
    %789 = vmatpush1.msra.mxu0 %v777
    %790 = vmatprep.subr.mxu0 0.0
    %791 = vmatpush1.msra.mxu0 %v776
    %792 = vmatprep.subr.mxu0 0.0
    %793 = vmatpush1.msra.mxu0 %v775
    %794 = vmatprep.subr.mxu0 0.0
    %795 = vmatpush1.msra.mxu0 %v774
    %796 = vmatprep.subr.mxu0 0.0
    %797 = vmatpush1.msra.mxu0 %v773
    %798 = vmatprep.subr.mxu0 0.0
    %799 = vmatpush1.msra.mxu0 %v772
    %800 = vmatprep.subr.mxu0 0.0
    %801 = vmatpush1.msra.mxu0 %v771
    %802 = vmatprep.subr.mxu0 0.0
    %803 = vmatpush1.msra.mxu0 %v770
    %804 = vmatprep.subr.mxu0 0.0
    %805 = vmatpush1.msra.mxu0 %v769
    %806 = vmatprep.subr.mxu0 0.0
    %807 = vmatpush1.msra.mxu0 %v768
    %808 = vmatprep.subr.mxu0 0.0
    %809 = vmatpush1.msra.mxu0 %v767
    %810 = vmatprep.subr.mxu0 0.0
    %811 = vmatpush1.msra.mxu0 %v766
    %812 = vmatprep.subr.mxu0 0.0
    %813 = vmatpush1.msra.mxu0 %v765
    %814 = vmatprep.subr.mxu0 0.0
    %815 = vmatpush1.msra.mxu0 %v764
    %816 = vmatprep.subr.mxu0 0.0
    %817 = vmatpush1.msra.mxu0 %v763
    %818 = vmatprep.subr.mxu0 0.0
    %819 = vmatpush2.msra.mxu0 0.0
    %820 = vmatprep.subr.mxu0 0.0
    %821 = vmatpush2.msra.mxu0 0.0
    %822 = vmatprep.subr.mxu0 0.0
    %823 = vmatpush2.msra.mxu0 0.0
    %824 = vmatprep.subr.mxu0 0.0
    %825 = vmatpush2.msra.mxu0 0.0
    %826 = vmatprep.subr.mxu0 0.0
    %827 = vmatpush2.msra.mxu0 0.0
    %828 = vmatprep.subr.mxu0 0.0
    %829 = vmatpush2.msra.mxu0 0.0
    %830 = vmatprep.subr.mxu0 0.0
    %831 = vmatpush2.msra.mxu0 0.0
    %832 = vmatprep.subr.mxu0 0.0
    %833 = vmatpush2.msra.mxu0 0.0
    %834 = vmatprep.subr.mxu0 0.0
    %835 = vmatpush2.msra.mxu0 0.0
    %836 = vmatprep.subr.mxu0 0.0
    %837 = vmatpush2.msra.mxu0 0.0
    %838 = vmatprep.subr.mxu0 0.0
    %839 = vmatpush2.msra.mxu0 0.0
    %840 = vmatprep.subr.mxu0 0.0
    %841 = vmatpush2.msra.mxu0 0.0
    %842 = vmatprep.subr.mxu0 0.0
    %843 = vmatpush2.msra.mxu0 0.0
    %844 = vmatprep.subr.mxu0 0.0
    %845 = vmatpush2.msra.mxu0 0.0
    %846 = vmatprep.subr.mxu0 0.0
    %847 = vmatpush2.msra.mxu0 0.0
    %848 = vmatprep.subr.mxu0 0.0
    %849 = vmatpush2.msra.mxu0 0.0
    %850 = vmatprep.mubr.f32.mxu0 0.0
    %851 = vmatmul.mubr.f32.gmra.mxu0 %v761
    %v852 = vpop.f32.mrf.mxu0
    %v853 = vadd.f32 %v784, %v852
    %v854 = vpop.f32.mrf.mxu0
    %855 = vmatprep.mubr.f32.mxu0 0.0
    %856 = vmatmul.mubr.f32.gmra.mxu0 %v762
    %v857 = vpop.f32.mrf.mxu0
    %v858 = vadd.f32 %v784, %v857
    %v859 = vpop.f32.mrf.mxu0
    %860 = vdwg.mxu0
    %v861 = vadd.f32 %v853, %v651
    %v862 = vadd.f32 %v858, %v652
    %v863 = vld [vmem:[%s12] sm:$0x1]
    %v864 = vld [vmem:[%s13] sm:$0x1]
    %v865 = vsel %vm61, %v861, 0.0
    %866 = vadd.xlane.f32.xlu0 %v865
    %v867 = vpop.xlane.xlu0 %866
    %v868 = vsel %vm61, %v862, 0.0
    %869 = vadd.xlane.f32.xlu0 %v868
    %v870 = vpop.xlane.xlu0 %869
    %v871 = vmul.f32 %v867, %v612
    %v872 = vmul.f32 %v870, %v612
    %v873 = vmul.f32 %v861, %v861
    %v874 = vmul.f32 %v862, %v862
    %v875 = vsel %vm61, %v873, 0.0
    %876 = vadd.xlane.f32.xlu0 %v875
    %v877 = vpop.xlane.xlu0 %876
    %v878 = vsel %vm61, %v874, 0.0
    %879 = vadd.xlane.f32.xlu0 %v878
    %v880 = vpop.xlane.xlu0 %879
    %v881 = vmul.f32 %v877, %v612
    %v882 = vmul.f32 %v880, %v612
    %v883 = vmul.f32 %v871, %v871
    %v884 = vmul.f32 %v872, %v872
    %v885 = vsub.f32 %v881, %v883
    %v886 = vsub.f32 %v882, %v884
    %v887 = vsub.f32 %v861, %v871
    %v888 = vsub.f32 %v862, %v872
    %v889 = vadd.f32 %v885, 1e-12
    %v890 = vadd.f32 %v886, 1e-12
    %v891 = vrsqrt.pop %v889
    %v892 = vrsqrt.pop %v890
    %v893 = vmul.f32 %v887, %v891
    %v894 = vmul.f32 %v888, %v892
    %v896 = vlaneseq
    %v897 = vshrl.u32 %v896, 7
    %v898 = vsub.s32 0, %v897
    %v899 = vrot.slane %v863, %v898
    %v901 = vmul.f32 %v893, %v899
    %v902 = vmul.f32 %v894, %v899
    %v904 = vlaneseq
    %v905 = vshrl.u32 %v904, 7
    %v906 = vsub.s32 0, %v905
    %v907 = vrot.slane %v864, %v906
    %v909 = vadd.f32 %v901, %v907
    %v910 = vadd.f32 %v902, %v907
    %911 = vst.msk [vmem:[#allocation2] sm:$0xff] %vm61, %v909
    %912 = vst.msk [vmem:[#allocation2 + $0x8] sm:$0xff] %vm61, %v910
    // Predicated region
    $region58: #{bert_layer.1} parent=1 // pred_check
      _
    $region59: #{bert_layer.1} parent=1 // pred_check_branch
      %914 = sbr.rel (0) target = $region61
    $region60: #{bert_layer.1} parent=1 // pred_region
      %s916 = ssub.s32 256, 256
      %917 = vsyncadd [#allocation3], %s916
      %s918 = sshll.u32 [#allocation2], 4
      %s919 = int_to_ptr.vmem [resolvable:$true] %s918
      %924 = dma.vmem_to_hbm [thread:$0]  %s919, 256, %s14, [#allocation3], 128, 128, 8
    $region61: #{bert_layer.1} parent=1 // pred_fallthru
      _
    // Predicated region
    $region62: #{bert_layer.1} parent=1 // pred_check
      _
    $region63: #{bert_layer.1} parent=1 // pred_check_branch
      %926 = sbr.rel (0) target = $region65
    $region64: #{bert_layer.1} parent=1 // pred_region
      %927 = dma.done [#allocation3], 256
    $region65: #{bert_layer.1} parent=1 // pred_fallthru
      _
    %928 = vsyncpa [#allocation3], 1

</llo_original>
